<compile_context>
chip_gen: v7x
topology: tpu7x:2x2x1
jax: 0.10.0
libtpu: 0.0.40
codegen_flags: <defaults>
</compile_context>

<pallas_src>
import functools

import jax
import jax.numpy as jnp
from jax.experimental import pallas as pl
from jax.experimental.pallas import tpu as pltpu

MARGIN = 2.0
PAIRWISE_EPS = 1e-6           # torch.pairwise_distance default eps

_LANE = 128
_TARGET_BLOCK_BYTES = 2 << 20  # ~2 MiB per-input block: 85%+ of HBM roofline
_MAX_ROW_BYTES = 32 << 10      # tile the feature dim once a row segment exceeds this


def _cdiv(a, b):
    return -(-a // b)


def _round_up(x, m):
    return _cdiv(x, m) * m


def _sublane_multiple(dtype):
    # Packed sublane multiple: f32 -> 8, bf16 -> 16, int8/fp8 -> 32.
    return max(8, 32 // jnp.dtype(dtype).itemsize)


def _vmem_capacity_bytes():
    try:
        return int(pltpu.get_tpu_info().vmem_capacity_bytes)
    except Exception:
        # Conservative fallback = v7x per-TC VMEM; safe on every generation.
        return 64 << 20


def _choose_tiles(B, D, dtype, tile_rows=None, tile_cols=None):
    itemsize = jnp.dtype(dtype).itemsize
    sub = _sublane_multiple(dtype)
    vmem_cap = _vmem_capacity_bytes()

    # --- feature (lane) tiling -------------------------------------------
    if tile_cols is not None:
        td = int(tile_cols)
    elif D * itemsize > _MAX_ROW_BYTES:
        td = _MAX_ROW_BYTES // itemsize
    else:
        td = D
    if td >= D:
        td = D
    else:
        td = max(_LANE, (td // _LANE) * _LANE)   # lane multiple required when != D
        if td >= D:
            td = D

    # --- batch (sublane) tiling ------------------------------------------
    row_bytes = td * itemsize
    # VMEM bytes per batch row across everything that scales with TB:
    # 2 inputs x 2 pipeline buffers, 2 lane-padded label buffers, acc scratch.
    per_row_vmem = 4 * row_bytes + 3 * _LANE * 4
    block_budget = min(vmem_cap * 2 // 5, 40 << 20)

    if tile_rows is not None:
        tb = int(tile_rows)
    else:
        tb = min(_TARGET_BLOCK_BYTES // row_bytes, block_budget // per_row_vmem)
    tb = max(sub, (tb // sub) * sub)
    tb = min(tb, _round_up(B, sub))

    # Give both TensorCores (v7x megacore) grid work when one batch tile would
    # cover the whole batch; essentially free on single-TC v5e/v6e.
    if tile_rows is None and _cdiv(B, tb) == 1 and _round_up(B, sub) >= 2 * sub:
        half = _round_up(_cdiv(B, 2), sub)
        if half < tb:
            tb = half

    # --- explicit scoped-VMEM budget --------------------------------------
    footprint = (4 * tb * td * itemsize          # 2 inputs x 2 pipeline buffers
                 + 2 * tb * _LANE * 4            # label blocks (lane padded)
                 + tb * _LANE * 4                # dist_sq accumulator scratch
                 + 2 * 8 * _LANE * 4)            # (8,128) output blocks
    vmem_limit = int(min(max(footprint * 3 // 2 + (2 << 20), 16 << 20),
                         vmem_cap * 9 // 10))
    return tb, td, vmem_limit


def _contrastive_kernel(x1_ref, x2_ref, label_ref, out_ref, acc_ref, *,
                        batch_size, feat_dim, tb, td, margin,
                        needs_row_mask, needs_col_mask):
    i = pl.program_id(0)
    j = pl.program_id(1)

    @pl.when(j == 0)
    def _():
        acc_ref[...] = jnp.zeros_like(acc_ref)

    diff = x1_ref[...].astype(jnp.float32) - x2_ref[...].astype(jnp.float32)
    diff = diff + PAIRWISE_EPS           # torch adds eps to the difference
    if needs_col_mask:
        col = j * td + jax.lax.broadcasted_iota(jnp.int32, (tb, td), 1)
        diff = jnp.where(col < feat_dim, diff, 0.0)
    acc_ref[...] += jnp.sum(diff * diff, axis=-1, keepdims=True)

    @pl.when(j == pl.num_programs(1) - 1)
    def _():
        label = label_ref[...].astype(jnp.float32)       # (tb, 1)
        dist_sq = acc_ref[...]                           # (tb, 1)
        dist = jnp.sqrt(dist_sq)                         # only needed for hinge term
        hinge = jnp.maximum(margin - dist, 0.0)
        per_pair = (1.0 - label) * dist_sq + label * (hinge * hinge)
        if needs_row_mask:
            # Zero contributions from padded rows of the ragged last batch tile.
            row = i * tb + jax.lax.broadcasted_iota(jnp.int32, (tb, 1), 0)
            per_pair = jnp.where(row < batch_size, per_pair, 0.0)
        # Lane-dense, unmasked (8,128) store; every element carries partial/1024
        # so the wrapper just sums the whole output (no strided gather).
        partial = jnp.sum(per_pair) * (1.0 / (8.0 * 128.0))
        out_ref[...] = jnp.full((8, _LANE), partial, dtype=jnp.float32)


def contrastive_loss(output1, output2, label, margin=MARGIN,
                     tile_rows=None, tile_cols=None):
    """output1, output2: (B, D); label: (B,) or (B, 1). Returns scalar f32 loss."""
    if label.ndim == 1:
        label = label.reshape(-1, 1)
    B, D = output1.shape

    tb, td, vmem_limit = _choose_tiles(B, D, output1.dtype, tile_rows, tile_cols)
    num_b = _cdiv(B, tb)
    num_d = _cdiv(D, td)
    needs_row_mask = (B % tb) != 0
    needs_col_mask = (D % td) != 0

    kernel = functools.partial(
        _contrastive_kernel,
        batch_size=B, feat_dim=D, tb=tb, td=td, margin=float(margin),
        needs_row_mask=needs_row_mask, needs_col_mask=needs_col_mask)

    itemsize = jnp.dtype(output1.dtype).itemsize
    cost = pl.CostEstimate(
        flops=4 * B * D,
        transcendentals=B,
        bytes_accessed=2 * B * D * itemsize + B * 4 + num_b * 8 * _LANE * 4)

    partials = pl.pallas_call(
        kernel,
        out_shape=jax.ShapeDtypeStruct((8 * num_b, _LANE), jnp.float32),
        grid_spec=pltpu.PrefetchScalarGridSpec(
            num_scalar_prefetch=0,
            grid=(num_b, num_d),
            in_specs=[
                pl.BlockSpec((tb, td), lambda i, j: (i, j)),
                pl.BlockSpec((tb, td), lambda i, j: (i, j)),
                pl.BlockSpec((tb, 1), lambda i, j: (i, 0)),
            ],
            out_specs=pl.BlockSpec((8, _LANE), lambda i, j: (i, 0)),
            scratch_shapes=[pltpu.VMEM((tb, 1), jnp.float32)],
        ),
        compiler_params=pltpu.CompilerParams(
            dimension_semantics=("parallel", "arbitrary"),
            vmem_limit_bytes=vmem_limit),
        cost_estimate=cost,
    )(output1, output2, label)

    # Mean over the true batch size (partials already carry the 1/1024 factor).
    return jnp.sum(partials) / B


def _reference_loss(output1, output2, label, margin=MARGIN):
    if label.ndim == 1:
        label = label.reshape(-1, 1)
    label = label.astype(jnp.float32)
    diff = output1.astype(jnp.float32) - output2.astype(jnp.float32) + PAIRWISE_EPS
    d = jnp.sqrt(jnp.sum(diff * diff, axis=-1, keepdims=True))
    return jnp.mean((1.0 - label) * d**2
                    + label * jnp.clip(margin - d, 0.0) ** 2)


if __name__ == "__main__":
    key = jax.random.PRNGKey(0)
    k1, k2, k3 = jax.random.split(key, 3)

    # Small demo shapes consistent with the module (pairs of feature vectors).
    B, D = 8, 32
    output1 = jax.random.normal(k1, (B, D), dtype=jnp.float32)
    output2 = jax.random.normal(k2, (B, D), dtype=jnp.float32)
    label = jax.random.bernoulli(k3, 0.5, (B, 1)).astype(jnp.float32)

    loss = contrastive_loss(output1, output2, label)
    jax.block_until_ready(loss)
    ref = _reference_loss(output1, output2, label)
    assert jnp.allclose(loss, ref, rtol=1e-5, atol=1e-5), (loss, ref)

    # Batch-tiled ragged case (multiple batch tiles + row-mask path).
    B2, D2 = 70, 32
    o1 = jax.random.normal(k1, (B2, D2), dtype=jnp.float32)
    o2 = jax.random.normal(k2, (B2, D2), dtype=jnp.float32)
    lb = jax.random.bernoulli(k3, 0.5, (B2, 1)).astype(jnp.float32)
    loss2 = contrastive_loss(o1, o2, lb, tile_rows=16)   # 5 tiles, ragged last
    jax.block_until_ready(loss2)
    ref2 = _reference_loss(o1, o2, lb)
    assert jnp.allclose(loss2, ref2, rtol=1e-5, atol=1e-5), (loss2, ref2)

    # Feature-tiled ragged case (D grid axis + accumulator + col-mask path,
    # plus the two-tile batch split).
    B3, D3 = 24, 300
    o1 = jax.random.normal(k1, (B3, D3), dtype=jnp.float32)
    o2 = jax.random.normal(k2, (B3, D3), dtype=jnp.float32)
    lb = jax.random.bernoulli(k3, 0.5, (B3, 1)).astype(jnp.float32)
    loss3 = contrastive_loss(o1, o2, lb, tile_cols=128)  # 3 D-tiles, ragged last
    jax.block_until_ready(loss3)
    ref3 = _reference_loss(o1, o2, lb)
    assert jnp.allclose(loss3, ref3, rtol=1e-5, atol=1e-5), (loss3, ref3)

    # bf16 inputs: packed sublane multiple (16) + padded batch tile.
    B4, D4 = 10, 64
    o1 = jax.random.normal(k1, (B4, D4), dtype=jnp.bfloat16)
    o2 = jax.random.normal(k2, (B4, D4), dtype=jnp.bfloat16)
    lb = jax.random.bernoulli(k3, 0.5, (B4, 1)).astype(jnp.float32)
    loss4 = contrastive_loss(o1, o2, lb)
    jax.block_until_ready(loss4)
    ref4 = _reference_loss(o1, o2, lb)
    assert jnp.allclose(loss4, ref4, rtol=1e-5, atol=1e-5), (loss4, ref4)

    print("KERNEL_OK")
</pallas_src>

<mosaic_0001>
module attributes {stable_mosaic.version = 11 : i64} {
  func.func @_contrastive_kernel(%arg0: i32, %arg1: i32, %arg2: memref<8x32xf32, #tpu.memory_space<vmem>>, %arg3: memref<8x32xf32, #tpu.memory_space<vmem>>, %arg4: memref<8x1xf32, #tpu.memory_space<vmem>>, %arg5: memref<8x128xf32, #tpu.memory_space<vmem>>, %arg6: memref<8x1xf32, #tpu.memory_space<vmem>>) attributes {dimension_semantics = [#tpu.dimension_semantics<parallel>, #tpu.dimension_semantics<arbitrary>], iteration_bounds = array<i64: 1, 1>, scalar_prefetch = 0 : i64, scratch_operands = 1 : i64, tpu.core_type = #tpu.core_type<tc>, window_params = [{transform_indices = @transform_0, window_bounds = array<i64: 8, 32>}, {transform_indices = @transform_1, window_bounds = array<i64: 8, 32>}, {transform_indices = @transform_2, window_bounds = array<i64: 8, 1>}, {transform_indices = @transform_3, window_bounds = array<i64: 8, 128>}]} {
    %c0_i32 = arith.constant 0 : i32
    %0 = arith.cmpi eq, %arg1, %c0_i32 : i32
    %1 = arith.extui %0 : i1 to i32
    %c0_i32_0 = arith.constant 0 : i32
    %2 = arith.cmpi ne, %1, %c0_i32_0 : i32
    scf.if %2 {
      %cst_11 = arith.constant 0.000000e+00 : f32
      %17 = vector.broadcast %cst_11 : f32 to vector<8x1xf32>
      %c0_12 = arith.constant 0 : index
      %c0_13 = arith.constant 0 : index
      %18 = vector.load %arg6[%c0_12, %c0_13] : memref<8x1xf32, #tpu.memory_space<vmem>>, vector<8x1xf32>
      tpu.vector_store %arg6[%c0_12, %c0_13], %17 {strides = array<i32>} : memref<8x1xf32, #tpu.memory_space<vmem>>, vector<8x1xf32>,
    } else {
    }
    %c0 = arith.constant 0 : index
    %c0_1 = arith.constant 0 : index
    %3 = vector.load %arg2[%c0, %c0_1] : memref<8x32xf32, #tpu.memory_space<vmem>>, vector<8x32xf32>
    %c0_2 = arith.constant 0 : index
    %c0_3 = arith.constant 0 : index
    %4 = vector.load %arg3[%c0_2, %c0_3] : memref<8x32xf32, #tpu.memory_space<vmem>>, vector<8x32xf32>
    %5 = arith.subf %3, %4 : vector<8x32xf32>
    %cst = arith.constant 9.99999997E-7 : f32
    %6 = vector.broadcast %cst : f32 to vector<8x32xf32>
    %7 = arith.addf %5, %6 : vector<8x32xf32>
    %c0_4 = arith.constant 0 : index
    %c0_5 = arith.constant 0 : index
    %8 = vector.load %arg6[%c0_4, %c0_5] : memref<8x1xf32, #tpu.memory_space<vmem>>, vector<8x1xf32>
    %9 = arith.mulf %7, %7 : vector<8x32xf32>
    %cst_6 = arith.constant dense<0.000000e+00> : vector<8xf32>
    %10 = vector.multi_reduction <add>, %9, %cst_6 [1] : vector<8x32xf32> to vector<8xf32>
    %11 = vector.shape_cast %10 : vector<8xf32> to vector<8x1xf32>
    %12 = arith.addf %8, %11 : vector<8x1xf32>
    %c0_7 = arith.constant 0 : index
    %c0_8 = arith.constant 0 : index
    %13 = vector.load %arg6[%c0_7, %c0_8] : memref<8x1xf32, #tpu.memory_space<vmem>>, vector<8x1xf32>
    tpu.vector_store %arg6[%c0_7, %c0_8], %12 {strides = array<i32>} : memref<8x1xf32, #tpu.memory_space<vmem>>, vector<8x1xf32>,
    %c0_i32_9 = arith.constant 0 : i32
    %14 = arith.cmpi eq, %arg1, %c0_i32_9 : i32
    %15 = arith.extui %14 : i1 to i32
    %c0_i32_10 = arith.constant 0 : i32
    %16 = arith.cmpi ne, %15, %c0_i32_10 : i32
    scf.if %16 {
      %c0_11 = arith.constant 0 : index
      %c0_12 = arith.constant 0 : index
      %17 = vector.load %arg4[%c0_11, %c0_12] : memref<8x1xf32, #tpu.memory_space<vmem>>, vector<8x1xf32>
      %c0_13 = arith.constant 0 : index
      %c0_14 = arith.constant 0 : index
      %18 = vector.load %arg6[%c0_13, %c0_14] : memref<8x1xf32, #tpu.memory_space<vmem>>, vector<8x1xf32>
      %19 = math.sqrt %18 : vector<8x1xf32>
      %cst_15 = arith.constant 2.000000e+00 : f32
      %20 = vector.broadcast %cst_15 : f32 to vector<8x1xf32>
      %21 = arith.subf %20, %19 : vector<8x1xf32>
      %cst_16 = arith.constant 0.000000e+00 : f32
      %22 = vector.broadcast %cst_16 : f32 to vector<8x1xf32>
      %23 = arith.maximumf %21, %22 : vector<8x1xf32>
      %cst_17 = arith.constant 1.000000e+00 : f32
      %24 = vector.broadcast %cst_17 : f32 to vector<8x1xf32>
      %25 = arith.subf %24, %17 : vector<8x1xf32>
      %26 = arith.mulf %25, %18 : vector<8x1xf32>
      %27 = arith.mulf %23, %23 : vector<8x1xf32>
      %28 = arith.mulf %17, %27 : vector<8x1xf32>
      %29 = arith.addf %26, %28 : vector<8x1xf32>
      %30 = vector.shape_cast %29 : vector<8x1xf32> to vector<1x8x1xf32>
      %cst_18 = arith.constant dense<0.000000e+00> : vector<1xf32>
      %31 = vector.multi_reduction <add>, %30, %cst_18 [1, 2] : vector<1x8x1xf32> to vector<1xf32>
      %32 = vector.shape_cast %31 : vector<1xf32> to vector<1x1x1xf32>
      %33 = vector.extract %32[0, 0, 0] : f32 from vector<1x1x1xf32>
      %cst_19 = arith.constant 9.765625E-4 : f32
      %34 = arith.mulf %33, %cst_19 : f32
      %35 = vector.broadcast %34 : f32 to vector<8x128xf32>
      %c0_20 = arith.constant 0 : index
      %c0_21 = arith.constant 0 : index
      %36 = vector.load %arg5[%c0_20, %c0_21] : memref<8x128xf32, #tpu.memory_space<vmem>>, vector<8x128xf32>
      tpu.vector_store %arg5[%c0_20, %c0_21], %35 {strides = array<i32>} : memref<8x128xf32, #tpu.memory_space<vmem>>, vector<8x128xf32>,
    } else {
    }
    return
  }
  func.func @transform_0(%arg0: i32, %arg1: i32) -> (i32, i32) {
    %c0_i32 = arith.constant 0 : i32
    return %arg0, %arg1 : i32, i32
  }
  func.func @transform_1(%arg0: i32, %arg1: i32) -> (i32, i32) {
    %c0_i32 = arith.constant 0 : i32
    return %arg0, %arg1 : i32, i32
  }
  func.func @transform_2(%arg0: i32, %arg1: i32) -> (i32, i32) {
    %c0_i32 = arith.constant 0 : i32
    %c0_i32_0 = arith.constant 0 : i32
    return %arg0, %c0_i32 : i32, i32
  }
  func.func @transform_3(%arg0: i32, %arg1: i32) -> (i32, i32) {
    %c0_i32 = arith.constant 0 : i32
    %c0_i32_0 = arith.constant 0 : i32
    return %arg0, %c0_i32 : i32, i32
  }
}

</mosaic_0001>

<llo_original>
// kernel: tpu_custom_call.1
$region0: #{tpu_custom_call.1}
  #allocation0 [shape = 'u32[]', space=smem, size = 0x4, offset = 0x4, fixed_abs, tag = 'smem constant byte address 0x4 - core index']
  #allocation1 [shape = 'u32[144,128]{1,0:T(1,128)}', space=vmem, size = 0x12000, scoped, tag = 'internal scratch']
  #allocation2 [shape = 'f32[8,1]{1,0:T(8,128)}', space=vmem, size = 0x1000, scoped, tag = 'scratch operand']
  %s0 = inlined_call_operand.vmem [shape: f32[8,32], index: 0, kind: input, shape index: {}]
  %s1 = inlined_call_operand.hbm [shape: f32[8,32], index: 1, kind: input, shape index: {}]
  %s2 = inlined_call_operand.vmem [shape: f32[8,1], index: 2, kind: input, shape index: {}]
  %s3 = inlined_call_operand.hbm [shape: f32[8,128], index: 3, kind: output, shape index: {}]
  %s4 = sld [smem:[#allocation0]]
  $region34: #{tpu_custom_call.1} parent=0
    _
  %s6 = ssub.s32 1, %s4
  %s7 = scalar_select 0, %s6, %s4
  $region1: #{tpu_custom_call.1} parent=0
    #allocation3 [shape = 'u8[4096]{0}', space=vmem, size = 0x1000, scoped, tag = 'input window, operand 1, single buffered']
    #allocation4 [shape = 's32[1]{0}', space=sflag, size = 0x4, scoped, tag = 'scoped memory for tpu_custom_call.1']
    #allocation5 [shape = 's32[1]{0}', space=sflag, size = 0x4, scoped, tag = 'scoped memory for tpu_custom_call.1']
    #allocation6 [shape = 'u8[4096]{0}', space=vmem, size = 0x1000, scoped, tag = 'output window, operand 0, single buffered']
    %8 = vsyncpa [#allocation4], 0
    %9 = vsyncpa [#allocation5], 0
    // Predicated region
    $region2: #{tpu_custom_call.1} parent=1 // pred_check
      _
    $region3: #{tpu_custom_call.1} parent=1 // pred_check_branch
      %11 = sbr.rel (0) target = $region5
    $region4: #{tpu_custom_call.1} parent=1 // pred_region
      _
    $region5: #{tpu_custom_call.1} parent=1 // pred_fallthru
      _
    // Predicated region
    $region6: #{tpu_custom_call.1} parent=1 // pred_check
      _
    $region7: #{tpu_custom_call.1} parent=1 // pred_check_branch
      %13 = sbr.rel (0) target = $region9
    $region8: #{tpu_custom_call.1} parent=1 // pred_region
      %s15 = ssub.s32 128, 128
      %16 = vsyncadd [#allocation4], %s15
      %s18 = sshll.u32 [#allocation3], 4
      %s19 = int_to_ptr.vmem [resolvable:$true] %s18
      %21 = dma.hbm_to_vmem [thread:$0]  %s1, 128, %s19, [#allocation4]
    $region9: #{tpu_custom_call.1} parent=1 // pred_fallthru
      _
    // Predicated region
    $region10: #{tpu_custom_call.1} parent=1 // pred_check
      _
    $region11: #{tpu_custom_call.1} parent=1 // pred_check_branch
      %23 = sbr.rel (0) target = $region13
    $region12: #{tpu_custom_call.1} parent=1 // pred_region
      _
    $region13: #{tpu_custom_call.1} parent=1 // pred_fallthru
      _
    // Predicated region
    $region14: #{tpu_custom_call.1} parent=1 // pred_check
      _
    $region15: #{tpu_custom_call.1} parent=1 // pred_check_branch
      %25 = sbr.rel (0) target = $region17
    $region16: #{tpu_custom_call.1} parent=1 // pred_region
      %26 = dma.done [#allocation4], 128
    $region17: #{tpu_custom_call.1} parent=1 // pred_fallthru
      _
    %p27 = scmp.eq.s32.totalorder 0, 0
    // Predicated region
    $region18: #{tpu_custom_call.1} parent=1 // pred_check
      %p28 = pneg %p27
    $region19: #{tpu_custom_call.1} parent=1 // pred_check_branch
      %30 = sbr.rel (%p28) target = $region21
    $region20: #{tpu_custom_call.1} parent=1 // pred_region
      %vm31 = vcmask 7168
      %32 = vst.msk [vmem:[#allocation2] sm:$0xff] %vm31, 0.0
    $region21: #{tpu_custom_call.1} parent=1 // pred_fallthru
      _
    %v33 = vld [vmem:[%s0] sm:$0xff]
    %v34 = vld [vmem:[#allocation3] sm:$0xff]
    %v35 = vsub.f32 %v33, %v34
    %v36 = vadd.f32 %v35, 1e-06
    %v37 = vld [vmem:[#allocation2] sm:$0xff]
    %v38 = vmul.f32 %v36, %v36
    %vm39 = vcmask 261120
    %v40 = vsel %vm39, %v38, 0.0
    %41 = vadd.xlane.f32.xlu0 %v40
    %v42 = vpop.xlane.xlu0 %41
    %v43 = vadd.f32 %v37, %v42
    %vm44 = vcmask 7168
    %45 = vst.msk [vmem:[#allocation2] sm:$0xff] %vm44, %v43
    // Predicated region
    $region22: #{tpu_custom_call.1} parent=1 // pred_check
      %p46 = pneg %p27
    $region23: #{tpu_custom_call.1} parent=1 // pred_check_branch
      %48 = sbr.rel (%p46) target = $region25
    $region24: #{tpu_custom_call.1} parent=1 // pred_region
      %v49 = vld [vmem:[%s2] sm:$0xff]
      %v50 = vld [vmem:[#allocation2] sm:$0xff]
      %v51 = vrsqrt.pop %v50
      %v52 = vmul.f32 %v50, %v51
      %vm53 = vcmp.eq.f32.partialorder %v50, inf
      %v54 = vsel %vm53, %v50, %v52
      %vm55 = vcmp.eq.f32.partialorder %v50, 0.0
      %v56 = vand.u32 %v50, 2147483648
      %v57 = vsel %vm55, %v56, %v54
      %v58 = vsub.f32 2.0, %v57
      %v59 = vmax.f32 %v58, 0.0
      %v60 = vsub.f32 1.0, %v49
      %v61 = vmul.f32 %v60, %v50
      %v62 = vmul.f32 %v59, %v59
      %v63 = vmul.f32 %v49, %v62
      %v64 = vadd.f32 %v61, %v63
      %v65 = vsel %vm44, %v64, 0.0
      %66 = vadd.xlane.f32.xlu0 %v65
      %v67 = vpop.xlane.xlu0 %66
      %v68 = vrot.slane %v67, 4
      %v69 = vadd.f32 %v67, %v68
      %v70 = vrot.slane %v69, 2
      %v71 = vadd.f32 %v69, %v70
      %v72 = vrot.slane %v71, 1
      %v73 = vadd.f32 %v71, %v72
      %s74 = vtos %v73
      %s75 = smul.f32 %s74, 0.0009765625
      %v76 = vstv %s75
      %77 = vst [vmem:[#allocation6] sm:$0xff] %v76
    $region25: #{tpu_custom_call.1} parent=1 // pred_fallthru
      _
    // Predicated region
    $region26: #{tpu_custom_call.1} parent=1 // pred_check
      _
    $region27: #{tpu_custom_call.1} parent=1 // pred_check_branch
      %79 = sbr.rel (0) target = $region29
    $region28: #{tpu_custom_call.1} parent=1 // pred_region
      %s81 = ssub.s32 128, 128
      %82 = vsyncadd [#allocation5], %s81
      %s84 = sshll.u32 [#allocation6], 4
      %s85 = int_to_ptr.vmem [resolvable:$true] %s84
      %87 = dma.vmem_to_hbm [thread:$0]  %s85, 128, %s3, [#allocation5]
    $region29: #{tpu_custom_call.1} parent=1 // pred_fallthru
      _
    // Predicated region
    $region30: #{tpu_custom_call.1} parent=1 // pred_check
      _
    $region31: #{tpu_custom_call.1} parent=1 // pred_check_branch
      %89 = sbr.rel (0) target = $region33
    $region32: #{tpu_custom_call.1} parent=1 // pred_region
      %90 = dma.done [#allocation5], 128
    $region33: #{tpu_custom_call.1} parent=1 // pred_fallthru
      _
    %91 = vsyncpa [#allocation4], 1
    %92 = vsyncpa [#allocation5], 1

</llo_original>
